<compile_context>
chip_gen: v6e
topology: v6e:2x2x1
jax: 0.10.0
libtpu: 0.0.40
codegen_flags: <defaults>
</compile_context>

<pallas_src>
import jax
import jax.numpy as jnp
from jax.experimental import pallas as pl
from jax.experimental.pallas import tpu as pltpu

_LANES = 512            # lane extent of each block (multiple of 128)
_MAX_TILE_ROWS = 1024   # sublane rows per block (multiple of 8)
_MIN_PALLAS_BATCH = 4096  # below this, plain XLA is as fast or faster


def _round_up(a: int, b: int) -> int:
    return ((a + b - 1) // b) * b


def _linear_kernel(params_ref, x_ref, o_ref):
    # params_ref: SMEM (3,) f32 = [w00, w01, b]
    # x_ref:      VMEM (2, TILE_R, C)  -- batch packed on (sublanes, lanes)
    # o_ref:      VMEM (TILE_R, C)     -- dense output slab
    w0 = params_ref[0]
    w1 = params_ref[1]
    b = params_ref[2]
    x0 = x_ref[0].astype(jnp.float32)   # (TILE_R, C), dense vregs
    x1 = x_ref[1].astype(jnp.float32)
    o_ref[...] = (x0 * w0 + x1 * w1 + b).astype(o_ref.dtype)


def linear_separator_forward(x, weight, bias, *,
                             max_tile_rows=_MAX_TILE_ROWS,
                             min_pallas_batch=_MIN_PALLAS_BATCH):
    """Pallas equivalent of nn.Linear(2, 1).forward(x): y = x @ W^T + b.

    Args:
      x:      (N, 2) float array
      weight: (1, 2) float array (PyTorch (out_features, in_features) layout)
      bias:   (1,)   float array
    Returns:
      (N, 1) array with x's dtype.
    """
    n, in_f = x.shape
    out_f = weight.shape[0]
    assert in_f == 2 and out_f == 1
    out_dtype = x.dtype

    if n < min_pallas_batch:
        # Small batch: kernel launch + layout plumbing dominates; plain XLA wins.
        return (x.astype(jnp.float32) @ weight.astype(jnp.float32).T
                + bias.astype(jnp.float32)).astype(out_dtype)

    lanes = _LANES
    r_total = -(-n // lanes)                 # rows of `lanes` batch points
    r_pad = _round_up(r_total, 8)            # sublane-aligned row count
    n_pad = r_pad * lanes
    tile_r = min(_round_up(max_tile_rows, 8), r_pad)
    grid = pl.cdiv(r_pad, tile_r)            # ragged last block allowed

    # Single fused relayout: (N, 2) -> (2, R, C); element (f, r, c) = x[r*C+c, f].
    xt = jnp.pad(x.T, ((0, 0), (0, n_pad - n))).reshape(2, r_pad, lanes)

    params = jnp.concatenate(
        [weight.reshape(-1), bias.reshape(-1)]).astype(jnp.float32)  # (3,)

    out = pl.pallas_call(
        _linear_kernel,
        out_shape=jax.ShapeDtypeStruct((r_pad, lanes), out_dtype),
        grid_spec=pl.GridSpec(
            grid=(grid,),
            in_specs=[
                pl.BlockSpec(memory_space=pltpu.MemorySpace.SMEM),      # params
                pl.BlockSpec((2, tile_r, lanes), lambda i: (0, i, 0)),  # x slab
            ],
            out_specs=pl.BlockSpec((tile_r, lanes), lambda i: (i, 0)),  # y slab
        ),
        compiler_params=pltpu.CompilerParams(
            dimension_semantics=("parallel",)),
    )(params, xt)

    # Row-major (R, C) flattens straight back to batch order: no output transpose.
    return out.reshape(-1)[:n].reshape(n, 1)


if __name__ == "__main__":
    key = jax.random.PRNGKey(0)
    k_x, k_w, k_b = jax.random.split(key, 3)

    IN_F, OUT_F = 2, 1
    # Deterministic init mimicking PyTorch's U(-1/sqrt(in), 1/sqrt(in)).
    bound = 1.0 / jnp.sqrt(jnp.float32(IN_F))
    weight = jax.random.uniform(k_w, (OUT_F, IN_F), minval=-bound, maxval=bound,
                                dtype=jnp.float32)
    bias = jax.random.uniform(k_b, (OUT_F,), minval=-bound, maxval=bound,
                              dtype=jnp.float32)

    def check(n, **kw):
        xi = jax.random.normal(k_x, (n, IN_F), dtype=jnp.float32)
        yi = jax.block_until_ready(linear_separator_forward(xi, weight, bias, **kw))
        ri = xi @ weight.T + bias
        assert yi.shape == (n, OUT_F)
        assert yi.dtype == xi.dtype
        assert jnp.allclose(yi, ri, atol=1e-5, rtol=1e-5)

    # 1) Tiny batch consistent with the module spec -> small-N XLA fallback path.
    check(8)
    # 2) Pallas path, single grid step, dense (rows, lanes) packing.
    check(8192)
    # 3) Pallas path, ragged batch (pads only to lane/sublane granularity).
    check(8325)
    # 4) Pallas path with >1 grid step (exercises pipelining / 2-TC sharding path).
    check(8192, max_tile_rows=8, min_pallas_batch=1)

    print("KERNEL_OK")
</pallas_src>

<mosaic_0001>
module attributes {stable_mosaic.version = 11 : i64} {
  func.func @_linear_kernel(%arg0: i32, %arg1: memref<3xf32, #tpu.memory_space<smem>>, %arg2: memref<2x16x512xf32, #tpu.memory_space<vmem>>, %arg3: memref<16x512xf32, #tpu.memory_space<vmem>>) attributes {dimension_semantics = [#tpu.dimension_semantics<parallel>], iteration_bounds = array<i64: 1>, scalar_prefetch = 0 : i64, scratch_operands = 0 : i64, tpu.core_type = #tpu.core_type<tc>, window_params = [{transform_indices = @transform_0, window_bounds = array<i64: 3>}, {transform_indices = @transform_1, window_bounds = array<i64: 2, 16, 512>}, {transform_indices = @transform_2, window_bounds = array<i64: 16, 512>}]} {
    %c0 = arith.constant 0 : index
    %0 = memref.load %arg1[%c0] : memref<3xf32, #tpu.memory_space<smem>>
    %c1 = arith.constant 1 : index
    %1 = memref.load %arg1[%c1] : memref<3xf32, #tpu.memory_space<smem>>
    %c2 = arith.constant 2 : index
    %2 = memref.load %arg1[%c2] : memref<3xf32, #tpu.memory_space<smem>>
    %c0_0 = arith.constant 0 : index
    %c0_1 = arith.constant 0 : index
    %c0_2 = arith.constant 0 : index
    %3 = vector.load %arg2[%c0_0, %c0_1, %c0_2] : memref<2x16x512xf32, #tpu.memory_space<vmem>>, vector<1x16x512xf32>
    %4 = vector.shape_cast %3 : vector<1x16x512xf32> to vector<16x512xf32>
    %c1_3 = arith.constant 1 : index
    %c0_4 = arith.constant 0 : index
    %c0_5 = arith.constant 0 : index
    %5 = vector.load %arg2[%c1_3, %c0_4, %c0_5] : memref<2x16x512xf32, #tpu.memory_space<vmem>>, vector<1x16x512xf32>
    %6 = vector.shape_cast %5 : vector<1x16x512xf32> to vector<16x512xf32>
    %7 = vector.broadcast %0 : f32 to vector<16x512xf32>
    %8 = arith.mulf %4, %7 : vector<16x512xf32>
    %9 = vector.broadcast %1 : f32 to vector<16x512xf32>
    %10 = arith.mulf %6, %9 : vector<16x512xf32>
    %11 = arith.addf %8, %10 : vector<16x512xf32>
    %12 = vector.broadcast %2 : f32 to vector<16x512xf32>
    %13 = arith.addf %11, %12 : vector<16x512xf32>
    %c0_6 = arith.constant 0 : index
    %c0_7 = arith.constant 0 : index
    %14 = vector.load %arg3[%c0_6, %c0_7] : memref<16x512xf32, #tpu.memory_space<vmem>>, vector<16x512xf32>
    tpu.vector_store %arg3[%c0_6, %c0_7], %13 {strides = array<i32>} : memref<16x512xf32, #tpu.memory_space<vmem>>, vector<16x512xf32>,
    return
  }
  func.func @transform_0(%arg0: i32) -> i32 {
    %c0_i32 = arith.constant 0 : i32
    %c0_i32_0 = arith.constant 0 : i32
    return %c0_i32 : i32
  }
  func.func @transform_1(%arg0: i32) -> (i32, i32, i32) {
    %c0_i32 = arith.constant 0 : i32
    %c0_i32_0 = arith.constant 0 : i32
    %c0_i32_1 = arith.constant 0 : i32
    return %c0_i32, %arg0, %c0_i32_0 : i32, i32, i32
  }
  func.func @transform_2(%arg0: i32) -> (i32, i32) {
    %c0_i32 = arith.constant 0 : i32
    %c0_i32_0 = arith.constant 0 : i32
    return %arg0, %c0_i32 : i32, i32
  }
}

</mosaic_0001>

<llo_original>
// kernel: tpu_custom_call.1
$region0: #{tpu_custom_call.1}
  #allocation0 [shape = 'u32[]', space=smem, size = 0x4, offset = 0x4, fixed_abs, tag = 'smem constant byte address 0x4 - core index']
  #allocation1 [shape = 'u32[144,128]{1,0:T(1,128)}', space=vmem, size = 0x12000, scoped, tag = 'internal scratch']
  %s0 = inlined_call_operand.hbm [shape: f32[3], index: 0, kind: input, shape index: {}]
  %s1 = inlined_call_operand.hbm [shape: f32[2,16,512], index: 1, kind: input, shape index: {}]
  %s2 = inlined_call_operand.hbm [shape: f32[16,512], index: 2, kind: output, shape index: {}]
  %s3 = sld [smem:[#allocation0]]
  $region26: #{tpu_custom_call.1} parent=0
    _
  %s5 = ssub.s32 1, %s3
  %s6 = scalar_select 0, %s5, %s3
  $region1: #{tpu_custom_call.1} parent=0
    #allocation2 [shape = 'u8[512]{0}', space=smem, size = 0x200, scoped, tag = 'input window, operand 0, single buffered']
    #allocation3 [shape = 's32[1]{0}', space=sflag, size = 0x4, scoped, tag = 'scoped memory for tpu_custom_call.1']
    #allocation4 [shape = 's32[1]{0}', space=sflag, size = 0x4, scoped, tag = 'scoped memory for tpu_custom_call.1']
    #allocation5 [shape = 's32[1]{0}', space=sflag, size = 0x4, scoped, tag = 'scoped memory for tpu_custom_call.1']
    #allocation6 [shape = 'u8[65536]{0}', space=vmem, size = 0x10000, scoped, tag = 'input window, operand 1, single buffered']
    #allocation7 [shape = 'u8[32768]{0}', space=vmem, size = 0x8000, scoped, tag = 'output window, operand 0, single buffered']
    %7 = vsyncpa [#allocation5], 0
    %8 = vsyncpa [#allocation3], 0
    %9 = vsyncpa [#allocation4], 0
    // Predicated region
    $region2: #{tpu_custom_call.1} parent=1 // pred_check
      _
    $region3: #{tpu_custom_call.1} parent=1 // pred_check_branch
      %11 = sbr.rel (0) target = $region5
    $region4: #{tpu_custom_call.1} parent=1 // pred_region
      %s13 = ssub.s32 16, 16
      %14 = vsyncadd [#allocation5], %s13
      %17 = dma.hbm_to_smem %s0, 16, [#allocation2], [#allocation5]
    $region5: #{tpu_custom_call.1} parent=1 // pred_fallthru
      _
    // Predicated region
    $region6: #{tpu_custom_call.1} parent=1 // pred_check
      _
    $region7: #{tpu_custom_call.1} parent=1 // pred_check_branch
      %19 = sbr.rel (0) target = $region9
    $region8: #{tpu_custom_call.1} parent=1 // pred_region
      %s21 = ssub.s32 2048, 2048
      %22 = vsyncadd [#allocation3], %s21
      %s23 = sshll.u32 [#allocation6], 4
      %s24 = int_to_ptr.vmem [resolvable:$true] %s23
      %29 = dma.hbm_to_vmem [thread:$0]  %s1, 2048, %s24, [#allocation3], 512, 512, 32
    $region9: #{tpu_custom_call.1} parent=1 // pred_fallthru
      _
    // Predicated region
    $region10: #{tpu_custom_call.1} parent=1 // pred_check
      _
    $region11: #{tpu_custom_call.1} parent=1 // pred_check_branch
      %31 = sbr.rel (0) target = $region13
    $region12: #{tpu_custom_call.1} parent=1 // pred_region
      %32 = dma.done [#allocation5], 16
    $region13: #{tpu_custom_call.1} parent=1 // pred_fallthru
      _
    // Predicated region
    $region14: #{tpu_custom_call.1} parent=1 // pred_check
      _
    $region15: #{tpu_custom_call.1} parent=1 // pred_check_branch
      %34 = sbr.rel (0) target = $region17
    $region16: #{tpu_custom_call.1} parent=1 // pred_region
      %35 = dma.done [#allocation3], 2048
    $region17: #{tpu_custom_call.1} parent=1 // pred_fallthru
      _
    %36 = sfence
    %s37 = sld [smem:[#allocation2]]
    %s38 = sld [smem:[#allocation2 + $0x1]]
    %s39 = sld [smem:[#allocation2 + $0x2]]
    %v40 = vld [vmem:[#allocation6] sm:$0xff]
    %v41 = vld [vmem:[#allocation6 + $0x8] sm:$0xff]
    %v42 = vld [vmem:[#allocation6 + $0x10] sm:$0xff]
    %v43 = vld [vmem:[#allocation6 + $0x18] sm:$0xff]
    %v44 = vld [vmem:[#allocation6 + $0x20] sm:$0xff]
    %v45 = vld [vmem:[#allocation6 + $0x28] sm:$0xff]
    %v46 = vld [vmem:[#allocation6 + $0x30] sm:$0xff]
    %v47 = vld [vmem:[#allocation6 + $0x38] sm:$0xff]
    %s48 = scalar_lea.vmem [#allocation6], 64
    %v49 = vld [vmem:[%s48] sm:$0xff]
    %v50 = vld [vmem:[%s48 + $0x8] sm:$0xff]
    %v51 = vld [vmem:[%s48 + $0x10] sm:$0xff]
    %v52 = vld [vmem:[%s48 + $0x18] sm:$0xff]
    %v53 = vld [vmem:[%s48 + $0x20] sm:$0xff]
    %v54 = vld [vmem:[%s48 + $0x28] sm:$0xff]
    %v55 = vld [vmem:[%s48 + $0x30] sm:$0xff]
    %v56 = vld [vmem:[%s48 + $0x38] sm:$0xff]
    %v57 = vstv %s37
    %v58 = vmul.f32 %v40, %v57
    %v59 = vmul.f32 %v41, %v57
    %v60 = vmul.f32 %v42, %v57
    %v61 = vmul.f32 %v43, %v57
    %v62 = vmul.f32 %v44, %v57
    %v63 = vmul.f32 %v45, %v57
    %v64 = vmul.f32 %v46, %v57
    %v65 = vmul.f32 %v47, %v57
    %v66 = vstv %s38
    %v67 = vmul.f32 %v49, %v66
    %v68 = vmul.f32 %v50, %v66
    %v69 = vmul.f32 %v51, %v66
    %v70 = vmul.f32 %v52, %v66
    %v71 = vmul.f32 %v53, %v66
    %v72 = vmul.f32 %v54, %v66
    %v73 = vmul.f32 %v55, %v66
    %v74 = vmul.f32 %v56, %v66
    %v75 = vadd.f32 %v58, %v67
    %v76 = vadd.f32 %v59, %v68
    %v77 = vadd.f32 %v60, %v69
    %v78 = vadd.f32 %v61, %v70
    %v79 = vadd.f32 %v62, %v71
    %v80 = vadd.f32 %v63, %v72
    %v81 = vadd.f32 %v64, %v73
    %v82 = vadd.f32 %v65, %v74
    %v83 = vstv %s39
    %v84 = vadd.f32 %v75, %v83
    %v85 = vadd.f32 %v76, %v83
    %v86 = vadd.f32 %v77, %v83
    %v87 = vadd.f32 %v78, %v83
    %v88 = vadd.f32 %v79, %v83
    %v89 = vadd.f32 %v80, %v83
    %v90 = vadd.f32 %v81, %v83
    %v91 = vadd.f32 %v82, %v83
    %92 = vst [vmem:[#allocation7] sm:$0xff] %v84
    %93 = vst [vmem:[#allocation7 + $0x8] sm:$0xff] %v85
    %94 = vst [vmem:[#allocation7 + $0x10] sm:$0xff] %v86
    %95 = vst [vmem:[#allocation7 + $0x18] sm:$0xff] %v87
    %96 = vst [vmem:[#allocation7 + $0x20] sm:$0xff] %v88
    %97 = vst [vmem:[#allocation7 + $0x28] sm:$0xff] %v89
    %98 = vst [vmem:[#allocation7 + $0x30] sm:$0xff] %v90
    %99 = vst [vmem:[#allocation7 + $0x38] sm:$0xff] %v91
    // Predicated region
    $region18: #{tpu_custom_call.1} parent=1 // pred_check
      _
    $region19: #{tpu_custom_call.1} parent=1 // pred_check_branch
      %101 = sbr.rel (0) target = $region21
    $region20: #{tpu_custom_call.1} parent=1 // pred_region
      %s103 = ssub.s32 1024, 1024
      %104 = vsyncadd [#allocation4], %s103
      %s105 = sshll.u32 [#allocation7], 4
      %s106 = int_to_ptr.vmem [resolvable:$true] %s105
      %111 = dma.vmem_to_hbm [thread:$0]  %s106, 1024, %s2, [#allocation4], 512, 512, 32
    $region21: #{tpu_custom_call.1} parent=1 // pred_fallthru
      _
    // Predicated region
    $region22: #{tpu_custom_call.1} parent=1 // pred_check
      _
    $region23: #{tpu_custom_call.1} parent=1 // pred_check_branch
      %113 = sbr.rel (0) target = $region25
    $region24: #{tpu_custom_call.1} parent=1 // pred_region
      %114 = dma.done [#allocation4], 1024
    $region25: #{tpu_custom_call.1} parent=1 // pred_fallthru
      _
    %115 = vsyncpa [#allocation3], 1
    %116 = vsyncpa [#allocation4], 1
    %117 = vsyncpa [#allocation5], 1

</llo_original>
